<compile_context>
chip_gen: v7x
topology: tpu7x:2x2x1
jax: 0.10.0
libtpu: 0.0.40
codegen_flags: <defaults>
</compile_context>

<pallas_src>
import jax
import jax.numpy as jnp
from jax.experimental import pallas as pl
from jax.experimental.pallas import tpu as pltpu


def _round_up(n: int, m: int) -> int:
    return ((n + m - 1) // m) * m


def _mlp_kernel(x_ref, w1_ref, w2_ref, b1_ref, b2_ref, o_ref):
    # Linear1 (MXU, f32 accumulate) + bias + ReLU (VPU).
    h = jnp.dot(x_ref[...], w1_ref[...],
                preferred_element_type=jnp.float32,
                precision=jax.lax.Precision.HIGHEST)
    h = jnp.maximum(h + b1_ref[...], 0.0)
    # Linear2 (MXU, f32 accumulate) + bias.
    y = jnp.dot(h.astype(w2_ref.dtype), w2_ref[...],
                preferred_element_type=jnp.float32,
                precision=jax.lax.Precision.HIGHEST)
    o_ref[...] = (y + b2_ref[...]).astype(o_ref.dtype)


def _vmem_capacity_bytes() -> int:
    try:
        return int(pltpu.get_tpu_info().vmem_capacity_bytes)
    except Exception:
        return 64 * 1024 * 1024  # v7x per-TensorCore floor; safe everywhere.


def linear_feature_extraction(x, x_lens, w1, b1, w2, b2,
                              *, block_m=None, compute_dtype=None):
    """y = Linear2(ReLU(Linear1(x))); x_lens is passed through unchanged.

    x:  (B, T, in_dim)
    w1: (in_dim, out_dim), b1: (out_dim,)   (stored in x @ W + b layout)
    w2: (out_dim, out_dim), b2: (out_dim,)
    """
    B, T, in_dim = x.shape
    out_dim = w1.shape[1]
    out_dtype = x.dtype
    M = B * T

    # Free reshape; no pad / slice HBM passes around the kernel.
    x2d = x.reshape(M, in_dim)
    if compute_dtype is not None:
        x2d = x2d.astype(compute_dtype)
        w1 = w1.astype(compute_dtype)
        w2 = w2.astype(compute_dtype)
    b1r = b1.reshape(1, out_dim).astype(jnp.float32)
    b2r = b2.reshape(1, out_dim).astype(jnp.float32)

    in_itemsize = jnp.dtype(x2d.dtype).itemsize
    out_itemsize = jnp.dtype(out_dtype).itemsize
    sub = {4: 8, 2: 16, 1: 32}.get(in_itemsize, 8)  # sublane multiple per dtype

    # Generation-aware VMEM budget (128 MiB on v5e/v6e, 64 MiB on v7x).
    vmem_budget = _vmem_capacity_bytes() * 3 // 4

    weight_bytes = (in_dim + out_dim) * out_dim * in_itemsize + 2 * out_dim * 4
    # Constant-index weights never need double buffering; only bother when big.
    single_buffer_weights = weight_bytes > (4 << 20) and hasattr(pl, "Buffered")
    resident_bytes = weight_bytes if single_buffer_weights else 2 * weight_bytes

    # Per-row VMEM: double-buffered x + out tiles, f32 intermediate h, cast temp.
    per_row = (2 * in_dim * in_itemsize + 2 * out_dim * out_itemsize
               + out_dim * 4 + out_dim * in_itemsize)
    tm_cap = max((vmem_budget - resident_bytes) // max(per_row, 1), sub)

    if block_m is None:
        # Fat tiles: >= ~2 MiB of x per tile (and >= 512 rows) so the ~0.35 us
        # per-grid-step overhead is negligible and DMAs run near HBM roofline.
        block_m = max((2 << 20) // max(in_dim * in_itemsize, 1), 512)
    tm = min(int(block_m), int(tm_cap))
    # Keep at least two row tiles when there is enough work, so the "parallel"
    # row axis can be split across v7x's two TensorCores.
    if M >= 256:
        tm = min(tm, _round_up(pl.cdiv(M, 2), 128))
    # MXU-friendly rounding: multiple of 128 when large, sublane multiple always.
    if tm >= 128:
        tm = (tm // 128) * 128
    tm = max(_round_up(tm, sub), sub)
    tm = min(tm, max(_round_up(M, sub), sub))  # never exceed the row count
    grid_m = pl.cdiv(M, tm)                    # ragged last block is clipped

    # Advisory cost estimate so XLA schedules around the custom call.
    cost = pl.CostEstimate(
        flops=2 * M * (in_dim + out_dim) * out_dim,
        transcendentals=0,
        bytes_accessed=(M * in_dim * in_itemsize
                        + M * out_dim * out_itemsize
                        + weight_bytes),
    )

    # Explicit VMEM limit, counting the live f32 intermediate h and temporaries.
    # TODO(synk): for very large out_dim an inner ~256-row sub-chunk loop would
    # keep h small and allow even larger tm; current budget just caps tm instead.
    work_bytes = (2 * tm * in_dim * in_itemsize
                  + 2 * tm * out_dim * out_itemsize
                  + tm * out_dim * (4 + in_itemsize)
                  + resident_bytes)
    vmem_limit = int(min(max(2 * work_bytes, 16 << 20), vmem_budget))

    def _resident_spec(shape):
        index_map = lambda i: (0,) * len(shape)
        if single_buffer_weights:
            return pl.BlockSpec(shape, index_map, pipeline_mode=pl.Buffered(1))
        return pl.BlockSpec(shape, index_map)

    out2d = pl.pallas_call(
        _mlp_kernel,
        out_shape=jax.ShapeDtypeStruct((M, out_dim), out_dtype),
        grid_spec=pltpu.PrefetchScalarGridSpec(
            num_scalar_prefetch=0,
            grid=(grid_m,),
            in_specs=[
                pl.BlockSpec((tm, in_dim), lambda i: (i, 0)),   # x row tile
                _resident_spec((in_dim, out_dim)),              # W1 (resident)
                _resident_spec((out_dim, out_dim)),             # W2 (resident)
                _resident_spec((1, out_dim)),                   # b1 (resident)
                _resident_spec((1, out_dim)),                   # b2 (resident)
            ],
            out_specs=pl.BlockSpec((tm, out_dim), lambda i: (i, 0)),
        ),
        compiler_params=pltpu.CompilerParams(
            dimension_semantics=("parallel",),   # independent row tiles
            vmem_limit_bytes=vmem_limit,
        ),
        cost_estimate=cost,
    )(x2d, w1, w2, b1r, b2r)

    y = out2d.reshape(B, T, out_dim).astype(out_dtype)
    return y, x_lens


def init_params(key, in_dim, out_dim):
    """Deterministic init mimicking nn.Linear's uniform(-1/sqrt(fan_in), +...)."""
    k1, k2, k3, k4 = jax.random.split(key, 4)
    bound1 = 1.0 / (in_dim ** 0.5)
    bound2 = 1.0 / (out_dim ** 0.5)
    w1 = jax.random.uniform(k1, (in_dim, out_dim), jnp.float32, -bound1, bound1)
    b1 = jax.random.uniform(k2, (out_dim,), jnp.float32, -bound1, bound1)
    w2 = jax.random.uniform(k3, (out_dim, out_dim), jnp.float32, -bound2, bound2)
    b2 = jax.random.uniform(k4, (out_dim,), jnp.float32, -bound2, bound2)
    return w1, b1, w2, b2


def _reference(x, w1, b1, w2, b2):
    B, T, in_dim = x.shape
    hp = jax.lax.Precision.HIGHEST
    h = jnp.maximum(jnp.dot(x.reshape(-1, in_dim), w1, precision=hp) + b1, 0.0)
    return (jnp.dot(h, w2, precision=hp) + b2).reshape(B, T, -1)


if __name__ == "__main__":
    key = jax.random.PRNGKey(0)

    # --- Primary small-shape check (matches the PyTorch module semantics) ---
    B, T, in_dim, out_dim = 2, 8, 32, 32
    kx, kp = jax.random.split(key)
    x = jax.random.normal(kx, (B, T, in_dim), jnp.float32)
    x_lens = jnp.array([T, T - 2], dtype=jnp.int32)
    w1, b1, w2, b2 = init_params(kp, in_dim, out_dim)

    y, y_lens = linear_feature_extraction(x, x_lens, w1, b1, w2, b2)
    y = jax.block_until_ready(y)

    ref = _reference(x, w1, b1, w2, b2)
    assert y.shape == (B, T, out_dim)
    assert jnp.allclose(y, ref, atol=1e-4, rtol=1e-4), "mismatch vs reference"
    assert (y_lens == x_lens).all()

    # --- Multi-tile path: default fat tiles, grid_m >= 2, ragged last block ---
    B2, T2 = 4, 300
    kx2, _ = jax.random.split(kx)
    x2 = jax.random.normal(kx2, (B2, T2, in_dim), jnp.float32)
    x2_lens = jnp.full((B2,), T2, dtype=jnp.int32)
    y2, _ = linear_feature_extraction(x2, x2_lens, w1, b1, w2, b2)
    y2 = jax.block_until_ready(y2)
    ref2 = _reference(x2, w1, b1, w2, b2)
    assert jnp.allclose(y2, ref2, atol=1e-4, rtol=1e-4), "tiled-path mismatch"

    # --- Explicit small block_m: many tiles + clipped ragged final block ---
    y3, _ = linear_feature_extraction(x2, x2_lens, w1, b1, w2, b2, block_m=256)
    y3 = jax.block_until_ready(y3)
    assert jnp.allclose(y3, ref2, atol=1e-4, rtol=1e-4), "ragged-path mismatch"

    print("KERNEL_OK")
</pallas_src>

<mosaic_0001>
module attributes {stable_mosaic.version = 11 : i64} {
  func.func @_mlp_kernel(%arg0: i32, %arg1: memref<16x32xf32, #tpu.memory_space<vmem>>, %arg2: memref<32x32xf32, #tpu.memory_space<vmem>>, %arg3: memref<32x32xf32, #tpu.memory_space<vmem>>, %arg4: memref<1x32xf32, #tpu.memory_space<vmem>>, %arg5: memref<1x32xf32, #tpu.memory_space<vmem>>, %arg6: memref<16x32xf32, #tpu.memory_space<vmem>>) attributes {dimension_semantics = [#tpu.dimension_semantics<parallel>], iteration_bounds = array<i64: 1>, scalar_prefetch = 0 : i64, scratch_operands = 0 : i64, tpu.core_type = #tpu.core_type<tc>, window_params = [{transform_indices = @transform_0, window_bounds = array<i64: 16, 32>}, {pipeline_mode = #tpu.pipeline_mode<synchronous>, transform_indices = @transform_1, window_bounds = array<i64: 32, 32>}, {pipeline_mode = #tpu.pipeline_mode<synchronous>, transform_indices = @transform_2, window_bounds = array<i64: 32, 32>}, {pipeline_mode = #tpu.pipeline_mode<synchronous>, transform_indices = @transform_3, window_bounds = array<i64: 1, 32>}, {pipeline_mode = #tpu.pipeline_mode<synchronous>, transform_indices = @transform_4, window_bounds = array<i64: 1, 32>}, {transform_indices = @transform_5, window_bounds = array<i64: 16, 32>}]} {
    %c0 = arith.constant 0 : index
    %c0_0 = arith.constant 0 : index
    %0 = vector.load %arg1[%c0, %c0_0] : memref<16x32xf32, #tpu.memory_space<vmem>>, vector<16x32xf32>
    %c0_1 = arith.constant 0 : index
    %c0_2 = arith.constant 0 : index
    %1 = vector.load %arg2[%c0_1, %c0_2] : memref<32x32xf32, #tpu.memory_space<vmem>>, vector<32x32xf32>
    %cst = arith.constant dense<0.000000e+00> : vector<16x32xf32>
    %2 = tpu.matmul %0, %1, %cst {dimension_numbers = #tpu.dot_dimension_numbers<[1], [0], [0], [1], [0, 0, 1, 1], [], []>, precision = #tpu.contract_precision<fp32>} : vector<16x32xf32>, vector<32x32xf32>, vector<16x32xf32> -> vector<16x32xf32>
    %c0_3 = arith.constant 0 : index
    %c0_4 = arith.constant 0 : index
    %3 = vector.load %arg4[%c0_3, %c0_4] : memref<1x32xf32, #tpu.memory_space<vmem>>, vector<1x32xf32>
    %4 = vector.broadcast %3 : vector<1x32xf32> to vector<16x32xf32>
    %5 = arith.addf %2, %4 : vector<16x32xf32>
    %cst_5 = arith.constant 0.000000e+00 : f32
    %6 = vector.broadcast %cst_5 : f32 to vector<16x32xf32>
    %7 = arith.maximumf %5, %6 : vector<16x32xf32>
    %c0_6 = arith.constant 0 : index
    %c0_7 = arith.constant 0 : index
    %8 = vector.load %arg3[%c0_6, %c0_7] : memref<32x32xf32, #tpu.memory_space<vmem>>, vector<32x32xf32>
    %cst_8 = arith.constant dense<0.000000e+00> : vector<16x32xf32>
    %9 = tpu.matmul %7, %8, %cst_8 {dimension_numbers = #tpu.dot_dimension_numbers<[1], [0], [0], [1], [0, 0, 1, 1], [], []>, precision = #tpu.contract_precision<fp32>} : vector<16x32xf32>, vector<32x32xf32>, vector<16x32xf32> -> vector<16x32xf32>
    %c0_9 = arith.constant 0 : index
    %c0_10 = arith.constant 0 : index
    %10 = vector.load %arg5[%c0_9, %c0_10] : memref<1x32xf32, #tpu.memory_space<vmem>>, vector<1x32xf32>
    %11 = vector.broadcast %10 : vector<1x32xf32> to vector<16x32xf32>
    %12 = arith.addf %9, %11 : vector<16x32xf32>
    %c0_11 = arith.constant 0 : index
    %c0_12 = arith.constant 0 : index
    %13 = vector.load %arg6[%c0_11, %c0_12] : memref<16x32xf32, #tpu.memory_space<vmem>>, vector<16x32xf32>
    tpu.vector_store %arg6[%c0_11, %c0_12], %12 {strides = array<i32>} : memref<16x32xf32, #tpu.memory_space<vmem>>, vector<16x32xf32>,
    return
  }
  func.func @transform_0(%arg0: i32) -> (i32, i32) {
    %c0_i32 = arith.constant 0 : i32
    %c0_i32_0 = arith.constant 0 : i32
    return %arg0, %c0_i32 : i32, i32
  }
  func.func @transform_1(%arg0: i32) -> (i32, i32) {
    %c0_i32 = arith.constant 0 : i32
    %c0_i32_0 = arith.constant 0 : i32
    %c0_i32_1 = arith.constant 0 : i32
    return %c0_i32, %c0_i32_0 : i32, i32
  }
  func.func @transform_2(%arg0: i32) -> (i32, i32) {
    %c0_i32 = arith.constant 0 : i32
    %c0_i32_0 = arith.constant 0 : i32
    %c0_i32_1 = arith.constant 0 : i32
    return %c0_i32, %c0_i32_0 : i32, i32
  }
  func.func @transform_3(%arg0: i32) -> (i32, i32) {
    %c0_i32 = arith.constant 0 : i32
    %c0_i32_0 = arith.constant 0 : i32
    %c0_i32_1 = arith.constant 0 : i32
    return %c0_i32, %c0_i32_0 : i32, i32
  }
  func.func @transform_4(%arg0: i32) -> (i32, i32) {
    %c0_i32 = arith.constant 0 : i32
    %c0_i32_0 = arith.constant 0 : i32
    %c0_i32_1 = arith.constant 0 : i32
    return %c0_i32, %c0_i32_0 : i32, i32
  }
  func.func @transform_5(%arg0: i32) -> (i32, i32) {
    %c0_i32 = arith.constant 0 : i32
    %c0_i32_0 = arith.constant 0 : i32
    return %arg0, %c0_i32 : i32, i32
  }
}

</mosaic_0001>

<llo_original>
// kernel: tpu_custom_call.1
$region0: #{tpu_custom_call.1}
  #allocation0 [shape = 'u32[]', space=smem, size = 0x4, offset = 0x4, fixed_abs, tag = 'smem constant byte address 0x4 - core index']
  #allocation1 [shape = 'u32[144,128]{1,0:T(1,128)}', space=vmem, size = 0x12000, scoped, tag = 'internal scratch']
  %s0 = inlined_call_operand.hbm [shape: f32[16,32], index: 0, kind: input, shape index: {}]
  %s1 = inlined_call_operand.hbm [shape: f32[32,32], index: 1, kind: input, shape index: {}]
  %s2 = inlined_call_operand.hbm [shape: f32[32,32], index: 2, kind: input, shape index: {}]
  %s3 = inlined_call_operand.vmem [shape: f32[1,32], index: 3, kind: input, shape index: {}]
  %s4 = inlined_call_operand.vmem [shape: f32[1,32], index: 4, kind: input, shape index: {}]
  %s5 = inlined_call_operand.hbm [shape: f32[16,32], index: 5, kind: output, shape index: {}]
  %s6 = sld [smem:[#allocation0]]
  $region42: #{tpu_custom_call.1} parent=0
    _
  %s8 = ssub.s32 1, %s6
  %s9 = scalar_select 0, %s8, %s6
  $region1: #{tpu_custom_call.1} parent=0
    #allocation2 [shape = 'u8[8192]{0}', space=vmem, size = 0x2000, scoped, tag = 'input window, operand 0, single buffered']
    #allocation3 [shape = 's32[1]{0}', space=sflag, size = 0x4, scoped, tag = 'scoped memory for tpu_custom_call.1']
    #allocation4 [shape = 's32[1]{0}', space=sflag, size = 0x4, scoped, tag = 'scoped memory for tpu_custom_call.1']
    #allocation5 [shape = 'u8[16384]{0}', space=vmem, size = 0x4000, scoped, tag = 'input window, operand 1, single buffered']
    #allocation6 [shape = 's32[1]{0}', space=sflag, size = 0x4, scoped, tag = 'scoped memory for tpu_custom_call.1']
    #allocation7 [shape = 'u8[16384]{0}', space=vmem, size = 0x4000, scoped, tag = 'input window, operand 2, single buffered']
    #allocation8 [shape = 'u8[8192]{0}', space=vmem, size = 0x2000, scoped, tag = 'output window, operand 0, single buffered']
    %10 = vsyncpa [#allocation3], 0
    %11 = vsyncpa [#allocation6], 0
    %12 = vsyncpa [#allocation4], 0
    // Predicated region
    $region2: #{tpu_custom_call.1} parent=1 // pred_check
      _
    $region3: #{tpu_custom_call.1} parent=1 // pred_check_branch
      %14 = sbr.rel (0) target = $region5
    $region4: #{tpu_custom_call.1} parent=1 // pred_region
      %s16 = ssub.s32 256, 256
      %17 = vsyncadd [#allocation3], %s16
      %s18 = sshll.u32 [#allocation2], 4
      %s19 = int_to_ptr.vmem [resolvable:$true] %s18
      %24 = dma.hbm_to_vmem [thread:$0]  %s0, 256, %s19, [#allocation3], 128, 128, 8
    $region5: #{tpu_custom_call.1} parent=1 // pred_fallthru
      _
    // Predicated region
    $region6: #{tpu_custom_call.1} parent=1 // pred_check
      _
    $region7: #{tpu_custom_call.1} parent=1 // pred_check_branch
      %26 = sbr.rel (0) target = $region9
    $region8: #{tpu_custom_call.1} parent=1 // pred_region
      %s28 = ssub.s32 512, 512
      %29 = vsyncadd [#allocation6], %s28
      %s30 = sshll.u32 [#allocation5], 4
      %s31 = int_to_ptr.vmem [resolvable:$true] %s30
      %36 = dma.hbm_to_vmem [thread:$0]  %s1, 512, %s31, [#allocation6], 128, 128, 8
    $region9: #{tpu_custom_call.1} parent=1 // pred_fallthru
      _
    // Predicated region
    $region10: #{tpu_custom_call.1} parent=1 // pred_check
      _
    $region11: #{tpu_custom_call.1} parent=1 // pred_check_branch
      %38 = sbr.rel (0) target = $region13
    $region12: #{tpu_custom_call.1} parent=1 // pred_region
      %s40 = ssub.s32 512, 512
      %41 = vsyncadd [#allocation6], %s40
      %s42 = sshll.u32 [#allocation7], 4
      %s43 = int_to_ptr.vmem [resolvable:$true] %s42
      %48 = dma.hbm_to_vmem [thread:$0]  %s2, 512, %s43, [#allocation6], 128, 128, 8
    $region13: #{tpu_custom_call.1} parent=1 // pred_fallthru
      _
    // Predicated region
    $region14: #{tpu_custom_call.1} parent=1 // pred_check
      _
    $region15: #{tpu_custom_call.1} parent=1 // pred_check_branch
      %50 = sbr.rel (0) target = $region17
    $region16: #{tpu_custom_call.1} parent=1 // pred_region
      _
    $region17: #{tpu_custom_call.1} parent=1 // pred_fallthru
      _
    // Predicated region
    $region18: #{tpu_custom_call.1} parent=1 // pred_check
      _
    $region19: #{tpu_custom_call.1} parent=1 // pred_check_branch
      %52 = sbr.rel (0) target = $region21
    $region20: #{tpu_custom_call.1} parent=1 // pred_region
      _
    $region21: #{tpu_custom_call.1} parent=1 // pred_fallthru
      _
    // Predicated region
    $region22: #{tpu_custom_call.1} parent=1 // pred_check
      _
    $region23: #{tpu_custom_call.1} parent=1 // pred_check_branch
      %54 = sbr.rel (0) target = $region25
    $region24: #{tpu_custom_call.1} parent=1 // pred_region
      %55 = dma.done [#allocation3], 256
    $region25: #{tpu_custom_call.1} parent=1 // pred_fallthru
      _
    // Predicated region
    $region26: #{tpu_custom_call.1} parent=1 // pred_check
      _
    $region27: #{tpu_custom_call.1} parent=1 // pred_check_branch
      %57 = sbr.rel (0) target = $region29
    $region28: #{tpu_custom_call.1} parent=1 // pred_region
      %58 = dma.done [#allocation6], 512
    $region29: #{tpu_custom_call.1} parent=1 // pred_fallthru
      _
    // Predicated region
    $region30: #{tpu_custom_call.1} parent=1 // pred_check
      _
    $region31: #{tpu_custom_call.1} parent=1 // pred_check_branch
      %60 = sbr.rel (0) target = $region33
    $region32: #{tpu_custom_call.1} parent=1 // pred_region
      %61 = dma.done [#allocation6], 512
    $region33: #{tpu_custom_call.1} parent=1 // pred_fallthru
      _
    %v62 = vld [vmem:[#allocation2] sm:$0xff]
    %v63 = vld [vmem:[#allocation2 + $0x8] sm:$0xff]
    %v64 = vld [vmem:[#allocation5] sm:$0xff]
    %v65 = vld [vmem:[#allocation5 + $0x8] sm:$0xff]
    %v66 = vld [vmem:[#allocation5 + $0x10] sm:$0xff]
    %v67 = vld [vmem:[#allocation5 + $0x18] sm:$0xff]
    %v68 = vld [vmem:[%s3] sm:$0x1]
    %v70 = vlaneseq
    %v71 = vshrl.u32 %v70, 7
    %v72 = vsub.s32 0, %v71
    %v73 = vrot.slane %v68, %v72
    %vm75 = vcmask 261120
    %v77 = vsel %vm75, %v62, 0
    %v80 = vsel %vm75, %v63, 0
    %82 = vmatprep.subr.mxu0 0.0
    %v83 = vand.u32 %v64, 4294901760
    %84 = vmatpush1.msra.mxu0 %v83
    %85 = vmatprep.subr.mxu0 0.0
    %v86 = vand.u32 %v65, 4294901760
    %87 = vmatpush1.msra.mxu0 %v86
    %88 = vmatprep.subr.mxu0 0.0
    %v89 = vand.u32 %v66, 4294901760
    %90 = vmatpush1.msra.mxu0 %v89
    %91 = vmatprep.subr.mxu0 0.0
    %v92 = vand.u32 %v67, 4294901760
    %93 = vmatpush1.msra.mxu0 %v92
    %94 = vmatprep.subr.mxu0 0.0
    %95 = vmatpush1.msra.mxu0 0.0
    %96 = vmatprep.subr.mxu0 0.0
    %97 = vmatpush1.msra.mxu0 0.0
    %98 = vmatprep.subr.mxu0 0.0
    %99 = vmatpush1.msra.mxu0 0.0
    %100 = vmatprep.subr.mxu0 0.0
    %101 = vmatpush1.msra.mxu0 0.0
    %102 = vmatprep.subr.mxu0 0.0
    %103 = vmatpush1.msra.mxu0 0.0
    %104 = vmatprep.subr.mxu0 0.0
    %105 = vmatpush1.msra.mxu0 0.0
    %106 = vmatprep.subr.mxu0 0.0
    %107 = vmatpush1.msra.mxu0 0.0
    %108 = vmatprep.subr.mxu0 0.0
    %109 = vmatpush1.msra.mxu0 0.0
    %110 = vmatprep.subr.mxu0 0.0
    %111 = vmatpush1.msra.mxu0 0.0
    %112 = vmatprep.subr.mxu0 0.0
    %113 = vmatpush1.msra.mxu0 0.0
    %114 = vmatprep.subr.mxu0 0.0
    %115 = vmatpush1.msra.mxu0 0.0
    %116 = vmatprep.subr.mxu0 0.0
    %117 = vmatpush1.msra.mxu0 0.0
    %118 = vmatprep.subr.mxu0 0.0
    %119 = vmatpush1.msra.mxu0 0.0
    %120 = vmatprep.subr.mxu0 0.0
    %121 = vmatpush1.msra.mxu0 0.0
    %122 = vmatprep.subr.mxu0 0.0
    %123 = vmatpush1.msra.mxu0 0.0
    %124 = vmatprep.subr.mxu0 0.0
    %125 = vmatpush1.msra.mxu0 0.0
    %126 = vmatprep.subr.mxu0 0.0
    %127 = vmatpush1.msra.mxu0 0.0
    %128 = vmatprep.subr.mxu0 0.0
    %129 = vmatpush1.msra.mxu0 0.0
    %130 = vmatprep.subr.mxu0 0.0
    %131 = vmatpush1.msra.mxu0 0.0
    %132 = vmatprep.subr.mxu0 0.0
    %133 = vmatpush1.msra.mxu0 0.0
    %134 = vmatprep.subr.mxu0 0.0
    %135 = vmatpush1.msra.mxu0 0.0
    %136 = vmatprep.subr.mxu0 0.0
    %137 = vmatpush1.msra.mxu0 0.0
    %138 = vmatprep.subr.mxu0 0.0
    %139 = vmatpush1.msra.mxu0 0.0
    %140 = vmatprep.subr.mxu0 0.0
    %141 = vmatpush1.msra.mxu0 0.0
    %142 = vmatprep.subr.mxu0 0.0
    %143 = vmatpush1.msra.mxu0 0.0
    %144 = vmatprep.subr.mxu0 0.0
    %145 = vmatpush1.msra.mxu0 0.0
    %146 = vmatprep.subr.mxu0 0.0
    %147 = vmatpush1.msra.mxu0 0.0
    %148 = vmatprep.subr.mxu0 0.0
    %149 = vmatpush1.msra.mxu0 0.0
    %150 = vmatprep.mubr.f32.mxu0 0.0
    %v151 = vand.u32 %v77, 4294901760
    %v152 = vsub.f32 %v77, %v151
    %v153 = vand.u32 %v152, 4294901760
    %v154 = vsub.f32 %v152, %v153
    %v155 = vand.u32 %v154, 4294901760
    %156 = vmatmul.mubr.f32.gmra.mrb[0].mxu0 %v155
    %v157 = vpop.f32.mrb[0].mxu0
    %v158 = vadd.f32 %v73, %v157
    %v159 = vpop.f32.mrb[0].mxu0
    %160 = vmatprep.mubr.f32.mxu0 0.0
    %v161 = vand.u32 %v80, 4294901760
    %v162 = vsub.f32 %v80, %v161
    %v163 = vand.u32 %v162, 4294901760
    %v164 = vsub.f32 %v162, %v163
    %v165 = vand.u32 %v164, 4294901760
    %166 = vmatmul.mubr.f32.gmra.mrb[0].mxu0 %v165
    %v167 = vpop.f32.mrb[0].mxu0
    %v168 = vadd.f32 %v73, %v167
    %v169 = vpop.f32.mrb[0].mxu0
    %170 = vdwg.mxu0
    %171 = vmatprep.subr.mxu0 0.0
    %v172 = vand.u32 %v64, 4294901760
    %v173 = vsub.f32 %v64, %v172
    %v174 = vand.u32 %v173, 4294901760
    %v175 = vsub.f32 %v173, %v174
    %v176 = vand.u32 %v175, 4294901760
    %177 = vmatpush1.msra.mxu0 %v176
    %178 = vmatprep.subr.mxu0 0.0
    %v179 = vand.u32 %v65, 4294901760
    %v180 = vsub.f32 %v65, %v179
    %v181 = vand.u32 %v180, 4294901760
    %v182 = vsub.f32 %v180, %v181
    %v183 = vand.u32 %v182, 4294901760
    %184 = vmatpush1.msra.mxu0 %v183
    %185 = vmatprep.subr.mxu0 0.0
    %v186 = vand.u32 %v66, 4294901760
    %v187 = vsub.f32 %v66, %v186
    %v188 = vand.u32 %v187, 4294901760
    %v189 = vsub.f32 %v187, %v188
    %v190 = vand.u32 %v189, 4294901760
    %191 = vmatpush1.msra.mxu0 %v190
    %192 = vmatprep.subr.mxu0 0.0
    %v193 = vand.u32 %v67, 4294901760
    %v194 = vsub.f32 %v67, %v193
    %v195 = vand.u32 %v194, 4294901760
    %v196 = vsub.f32 %v194, %v195
    %v197 = vand.u32 %v196, 4294901760
    %198 = vmatpush1.msra.mxu0 %v197
    %199 = vmatprep.subr.mxu0 0.0
    %200 = vmatpush1.msra.mxu0 0.0
    %201 = vmatprep.subr.mxu0 0.0
    %202 = vmatpush1.msra.mxu0 0.0
    %203 = vmatprep.subr.mxu0 0.0
    %204 = vmatpush1.msra.mxu0 0.0
    %205 = vmatprep.subr.mxu0 0.0
    %206 = vmatpush1.msra.mxu0 0.0
    %207 = vmatprep.subr.mxu0 0.0
    %208 = vmatpush1.msra.mxu0 0.0
    %209 = vmatprep.subr.mxu0 0.0
    %210 = vmatpush1.msra.mxu0 0.0
    %211 = vmatprep.subr.mxu0 0.0
    %212 = vmatpush1.msra.mxu0 0.0
    %213 = vmatprep.subr.mxu0 0.0
    %214 = vmatpush1.msra.mxu0 0.0
    %215 = vmatprep.subr.mxu0 0.0
    %216 = vmatpush1.msra.mxu0 0.0
    %217 = vmatprep.subr.mxu0 0.0
    %218 = vmatpush1.msra.mxu0 0.0
    %219 = vmatprep.subr.mxu0 0.0
    %220 = vmatpush1.msra.mxu0 0.0
    %221 = vmatprep.subr.mxu0 0.0
    %222 = vmatpush1.msra.mxu0 0.0
    %223 = vmatprep.subr.mxu0 0.0
    %224 = vmatpush1.msra.mxu0 0.0
    %225 = vmatprep.subr.mxu0 0.0
    %226 = vmatpush1.msra.mxu0 0.0
    %227 = vmatprep.subr.mxu0 0.0
    %228 = vmatpush1.msra.mxu0 0.0
    %229 = vmatprep.subr.mxu0 0.0
    %230 = vmatpush1.msra.mxu0 0.0
    %231 = vmatprep.subr.mxu0 0.0
    %232 = vmatpush1.msra.mxu0 0.0
    %233 = vmatprep.subr.mxu0 0.0
    %234 = vmatpush1.msra.mxu0 0.0
    %235 = vmatprep.subr.mxu0 0.0
    %236 = vmatpush1.msra.mxu0 0.0
    %237 = vmatprep.subr.mxu0 0.0
    %238 = vmatpush1.msra.mxu0 0.0
    %239 = vmatprep.subr.mxu0 0.0
    %240 = vmatpush1.msra.mxu0 0.0
    %241 = vmatprep.subr.mxu0 0.0
    %242 = vmatpush1.msra.mxu0 0.0
    %243 = vmatprep.subr.mxu0 0.0
    %244 = vmatpush1.msra.mxu0 0.0
    %245 = vmatprep.subr.mxu0 0.0
    %246 = vmatpush1.msra.mxu0 0.0
    %247 = vmatprep.subr.mxu0 0.0
    %248 = vmatpush1.msra.mxu0 0.0
    %249 = vmatprep.subr.mxu0 0.0
    %250 = vmatpush1.msra.mxu0 0.0
    %251 = vmatprep.subr.mxu0 0.0
    %252 = vmatpush1.msra.mxu0 0.0
    %253 = vmatprep.subr.mxu0 0.0
    %254 = vmatpush1.msra.mxu0 0.0
    %255 = vmatprep.mubr.f32.mxu0 0.0
    %v256 = vand.u32 %v77, 4294901760
    %257 = vmatmul.mubr.f32.gmra.mrb[0].mxu0 %v256
    %v258 = vpop.f32.mrb[0].mxu0
    %v259 = vadd.f32 %v158, %v258
    %v260 = vpop.f32.mrb[0].mxu0
    %261 = vmatprep.mubr.f32.mxu0 0.0
    %v262 = vand.u32 %v80, 4294901760
    %263 = vmatmul.mubr.f32.gmra.mrb[0].mxu0 %v262
    %v264 = vpop.f32.mrb[0].mxu0
    %v265 = vadd.f32 %v168, %v264
    %v266 = vpop.f32.mrb[0].mxu0
    %267 = vdwg.mxu0
    %268 = vmatprep.subr.mxu0 0.0
    %v269 = vand.u32 %v64, 4294901760
    %v270 = vsub.f32 %v64, %v269
    %271 = vmatpush1.msra.mxu0 %v270
    %272 = vmatprep.subr.mxu0 0.0
    %v273 = vand.u32 %v65, 4294901760
    %v274 = vsub.f32 %v65, %v273
    %275 = vmatpush1.msra.mxu0 %v274
    %276 = vmatprep.subr.mxu0 0.0
    %v277 = vand.u32 %v66, 4294901760
    %v278 = vsub.f32 %v66, %v277
    %279 = vmatpush1.msra.mxu0 %v278
    %280 = vmatprep.subr.mxu0 0.0
    %v281 = vand.u32 %v67, 4294901760
    %v282 = vsub.f32 %v67, %v281
    %283 = vmatpush1.msra.mxu0 %v282
    %284 = vmatprep.subr.mxu0 0.0
    %285 = vmatpush1.msra.mxu0 0.0
    %286 = vmatprep.subr.mxu0 0.0
    %287 = vmatpush1.msra.mxu0 0.0
    %288 = vmatprep.subr.mxu0 0.0
    %289 = vmatpush1.msra.mxu0 0.0
    %290 = vmatprep.subr.mxu0 0.0
    %291 = vmatpush1.msra.mxu0 0.0
    %292 = vmatprep.subr.mxu0 0.0
    %293 = vmatpush1.msra.mxu0 0.0
    %294 = vmatprep.subr.mxu0 0.0
    %295 = vmatpush1.msra.mxu0 0.0
    %296 = vmatprep.subr.mxu0 0.0
    %297 = vmatpush1.msra.mxu0 0.0
    %298 = vmatprep.subr.mxu0 0.0
    %299 = vmatpush1.msra.mxu0 0.0
    %300 = vmatprep.subr.mxu0 0.0
    %301 = vmatpush1.msra.mxu0 0.0
    %302 = vmatprep.subr.mxu0 0.0
    %303 = vmatpush1.msra.mxu0 0.0
    %304 = vmatprep.subr.mxu0 0.0
    %305 = vmatpush1.msra.mxu0 0.0
    %306 = vmatprep.subr.mxu0 0.0
    %307 = vmatpush1.msra.mxu0 0.0
    %308 = vmatprep.subr.mxu0 0.0
    %309 = vmatpush1.msra.mxu0 0.0
    %310 = vmatprep.subr.mxu0 0.0
    %311 = vmatpush1.msra.mxu0 0.0
    %312 = vmatprep.subr.mxu0 0.0
    %313 = vmatpush1.msra.mxu0 0.0
    %314 = vmatprep.subr.mxu0 0.0
    %315 = vmatpush1.msra.mxu0 0.0
    %316 = vmatprep.subr.mxu0 0.0
    %317 = vmatpush1.msra.mxu0 0.0
    %318 = vmatprep.subr.mxu0 0.0
    %319 = vmatpush1.msra.mxu0 0.0
    %320 = vmatprep.subr.mxu0 0.0
    %321 = vmatpush1.msra.mxu0 0.0
    %322 = vmatprep.subr.mxu0 0.0
    %323 = vmatpush1.msra.mxu0 0.0
    %324 = vmatprep.subr.mxu0 0.0
    %325 = vmatpush1.msra.mxu0 0.0
    %326 = vmatprep.subr.mxu0 0.0
    %327 = vmatpush1.msra.mxu0 0.0
    %328 = vmatprep.subr.mxu0 0.0
    %329 = vmatpush1.msra.mxu0 0.0
    %330 = vmatprep.subr.mxu0 0.0
    %331 = vmatpush1.msra.mxu0 0.0
    %332 = vmatprep.subr.mxu0 0.0
    %333 = vmatpush1.msra.mxu0 0.0
    %334 = vmatprep.subr.mxu0 0.0
    %335 = vmatpush1.msra.mxu0 0.0
    %336 = vmatprep.subr.mxu0 0.0
    %337 = vmatpush1.msra.mxu0 0.0
    %338 = vmatprep.subr.mxu0 0.0
    %339 = vmatpush1.msra.mxu0 0.0
    %340 = vmatprep.mubr.f32.mxu0 0.0
    %v341 = vand.u32 %v77, 4294901760
    %v342 = vsub.f32 %v77, %v341
    %343 = vmatmul.mubr.f32.gmra.mrb[0].mxu0 %v342
    %v344 = vpop.f32.mrb[0].mxu0
    %v345 = vadd.f32 %v259, %v344
    %v346 = vpop.f32.mrb[0].mxu0
    %347 = vmatprep.mubr.f32.mxu0 0.0
    %v348 = vand.u32 %v80, 4294901760
    %v349 = vsub.f32 %v80, %v348
    %350 = vmatmul.mubr.f32.gmra.mrb[0].mxu0 %v349
    %v351 = vpop.f32.mrb[0].mxu0
    %v352 = vadd.f32 %v265, %v351
    %v353 = vpop.f32.mrb[0].mxu0
    %354 = vdwg.mxu0
    %355 = vmatprep.subr.mxu0 0.0
    %v356 = vand.u32 %v64, 4294901760
    %357 = vmatpush1.msra.mxu0 %v356
    %358 = vmatprep.subr.mxu0 0.0
    %v359 = vand.u32 %v65, 4294901760
    %360 = vmatpush1.msra.mxu0 %v359
    %361 = vmatprep.subr.mxu0 0.0
    %v362 = vand.u32 %v66, 4294901760
    %363 = vmatpush1.msra.mxu0 %v362
    %364 = vmatprep.subr.mxu0 0.0
    %v365 = vand.u32 %v67, 4294901760
    %366 = vmatpush1.msra.mxu0 %v365
    %367 = vmatprep.subr.mxu0 0.0
    %368 = vmatpush1.msra.mxu0 0.0
    %369 = vmatprep.subr.mxu0 0.0
    %370 = vmatpush1.msra.mxu0 0.0
    %371 = vmatprep.subr.mxu0 0.0
    %372 = vmatpush1.msra.mxu0 0.0
    %373 = vmatprep.subr.mxu0 0.0
    %374 = vmatpush1.msra.mxu0 0.0
    %375 = vmatprep.subr.mxu0 0.0
    %376 = vmatpush1.msra.mxu0 0.0
    %377 = vmatprep.subr.mxu0 0.0
    %378 = vmatpush1.msra.mxu0 0.0
    %379 = vmatprep.subr.mxu0 0.0
    %380 = vmatpush1.msra.mxu0 0.0
    %381 = vmatprep.subr.mxu0 0.0
    %382 = vmatpush1.msra.mxu0 0.0
    %383 = vmatprep.subr.mxu0 0.0
    %384 = vmatpush1.msra.mxu0 0.0
    %385 = vmatprep.subr.mxu0 0.0
    %386 = vmatpush1.msra.mxu0 0.0
    %387 = vmatprep.subr.mxu0 0.0
    %388 = vmatpush1.msra.mxu0 0.0
    %389 = vmatprep.subr.mxu0 0.0
    %390 = vmatpush1.msra.mxu0 0.0
    %391 = vmatprep.subr.mxu0 0.0
    %392 = vmatpush1.msra.mxu0 0.0
    %393 = vmatprep.subr.mxu0 0.0
    %394 = vmatpush1.msra.mxu0 0.0
    %395 = vmatprep.subr.mxu0 0.0
    %396 = vmatpush1.msra.mxu0 0.0
    %397 = vmatprep.subr.mxu0 0.0
    %398 = vmatpush1.msra.mxu0 0.0
    %399 = vmatprep.subr.mxu0 0.0
    %400 = vmatpush1.msra.mxu0 0.0
    %401 = vmatprep.subr.mxu0 0.0
    %402 = vmatpush1.msra.mxu0 0.0
    %403 = vmatprep.subr.mxu0 0.0
    %404 = vmatpush1.msra.mxu0 0.0
    %405 = vmatprep.subr.mxu0 0.0
    %406 = vmatpush1.msra.mxu0 0.0
    %407 = vmatprep.subr.mxu0 0.0
    %408 = vmatpush1.msra.mxu0 0.0
    %409 = vmatprep.subr.mxu0 0.0
    %410 = vmatpush1.msra.mxu0 0.0
    %411 = vmatprep.subr.mxu0 0.0
    %412 = vmatpush1.msra.mxu0 0.0
    %413 = vmatprep.subr.mxu0 0.0
    %414 = vmatpush1.msra.mxu0 0.0
    %415 = vmatprep.subr.mxu0 0.0
    %416 = vmatpush1.msra.mxu0 0.0
    %417 = vmatprep.subr.mxu0 0.0
    %418 = vmatpush1.msra.mxu0 0.0
    %419 = vmatprep.subr.mxu0 0.0
    %420 = vmatpush1.msra.mxu0 0.0
    %421 = vmatprep.subr.mxu0 0.0
    %422 = vmatpush1.msra.mxu0 0.0
    %423 = vmatprep.mubr.f32.mxu0 0.0
    %v424 = vand.u32 %v77, 4294901760
    %v425 = vsub.f32 %v77, %v424
    %v426 = vand.u32 %v425, 4294901760
    %427 = vmatmul.mubr.f32.gmra.mrb[0].mxu0 %v426
    %v428 = vpop.f32.mrb[0].mxu0
    %v429 = vadd.f32 %v345, %v428
    %v430 = vpop.f32.mrb[0].mxu0
    %431 = vmatprep.mubr.f32.mxu0 0.0
    %v432 = vand.u32 %v80, 4294901760
    %v433 = vsub.f32 %v80, %v432
    %v434 = vand.u32 %v433, 4294901760
    %435 = vmatmul.mubr.f32.gmra.mrb[0].mxu0 %v434
    %v436 = vpop.f32.mrb[0].mxu0
    %v437 = vadd.f32 %v352, %v436
    %v438 = vpop.f32.mrb[0].mxu0
    %439 = vdwg.mxu0
    %440 = vmatprep.subr.mxu0 0.0
    %v441 = vand.u32 %v64, 4294901760
    %v442 = vsub.f32 %v64, %v441
    %v443 = vand.u32 %v442, 4294901760
    %444 = vmatpush1.msra.mxu0 %v443
    %445 = vmatprep.subr.mxu0 0.0
    %v446 = vand.u32 %v65, 4294901760
    %v447 = vsub.f32 %v65, %v446
    %v448 = vand.u32 %v447, 4294901760
    %449 = vmatpush1.msra.mxu0 %v448
    %450 = vmatprep.subr.mxu0 0.0
    %v451 = vand.u32 %v66, 4294901760
    %v452 = vsub.f32 %v66, %v451
    %v453 = vand.u32 %v452, 4294901760
    %454 = vmatpush1.msra.mxu0 %v453
    %455 = vmatprep.subr.mxu0 0.0
    %v456 = vand.u32 %v67, 4294901760
    %v457 = vsub.f32 %v67, %v456
    %v458 = vand.u32 %v457, 4294901760
    %459 = vmatpush1.msra.mxu0 %v458
    %460 = vmatprep.subr.mxu0 0.0
    %461 = vmatpush1.msra.mxu0 0.0
    %462 = vmatprep.subr.mxu0 0.0
    %463 = vmatpush1.msra.mxu0 0.0
    %464 = vmatprep.subr.mxu0 0.0
    %465 = vmatpush1.msra.mxu0 0.0
    %466 = vmatprep.subr.mxu0 0.0
    %467 = vmatpush1.msra.mxu0 0.0
    %468 = vmatprep.subr.mxu0 0.0
    %469 = vmatpush1.msra.mxu0 0.0
    %470 = vmatprep.subr.mxu0 0.0
    %471 = vmatpush1.msra.mxu0 0.0
    %472 = vmatprep.subr.mxu0 0.0
    %473 = vmatpush1.msra.mxu0 0.0
    %474 = vmatprep.subr.mxu0 0.0
    %475 = vmatpush1.msra.mxu0 0.0
    %476 = vmatprep.subr.mxu0 0.0
    %477 = vmatpush1.msra.mxu0 0.0
    %478 = vmatprep.subr.mxu0 0.0
    %479 = vmatpush1.msra.mxu0 0.0
    %480 = vmatprep.subr.mxu0 0.0
    %481 = vmatpush1.msra.mxu0 0.0
    %482 = vmatprep.subr.mxu0 0.0
    %483 = vmatpush1.msra.mxu0 0.0
    %484 = vmatprep.subr.mxu0 0.0
    %485 = vmatpush1.msra.mxu0 0.0
    %486 = vmatprep.subr.mxu0 0.0
    %487 = vmatpush1.msra.mxu0 0.0
    %488 = vmatprep.subr.mxu0 0.0
    %489 = vmatpush1.msra.mxu0 0.0
    %490 = vmatprep.subr.mxu0 0.0
    %491 = vmatpush1.msra.mxu0 0.0
    %492 = vmatprep.subr.mxu0 0.0
    %493 = vmatpush1.msra.mxu0 0.0
    %494 = vmatprep.subr.mxu0 0.0
    %495 = vmatpush1.msra.mxu0 0.0
    %496 = vmatprep.subr.mxu0 0.0
    %497 = vmatpush1.msra.mxu0 0.0
    %498 = vmatprep.subr.mxu0 0.0
    %499 = vmatpush1.msra.mxu0 0.0
    %500 = vmatprep.subr.mxu0 0.0
    %501 = vmatpush1.msra.mxu0 0.0
    %502 = vmatprep.subr.mxu0 0.0
    %503 = vmatpush1.msra.mxu0 0.0
    %504 = vmatprep.subr.mxu0 0.0
    %505 = vmatpush1.msra.mxu0 0.0
    %506 = vmatprep.subr.mxu0 0.0
    %507 = vmatpush1.msra.mxu0 0.0
    %508 = vmatprep.subr.mxu0 0.0
    %509 = vmatpush1.msra.mxu0 0.0
    %510 = vmatprep.subr.mxu0 0.0
    %511 = vmatpush1.msra.mxu0 0.0
    %512 = vmatprep.subr.mxu0 0.0
    %513 = vmatpush1.msra.mxu0 0.0
    %514 = vmatprep.subr.mxu0 0.0
    %515 = vmatpush1.msra.mxu0 0.0
    %516 = vmatprep.mubr.f32.mxu0 0.0
    %v517 = vand.u32 %v77, 4294901760
    %518 = vmatmul.mubr.f32.gmra.mrb[0].mxu0 %v517
    %v519 = vpop.f32.mrb[0].mxu0
    %v520 = vadd.f32 %v429, %v519
    %v521 = vpop.f32.mrb[0].mxu0
    %522 = vmatprep.mubr.f32.mxu0 0.0
    %v523 = vand.u32 %v80, 4294901760
    %524 = vmatmul.mubr.f32.gmra.mrb[0].mxu0 %v523
    %v525 = vpop.f32.mrb[0].mxu0
    %v526 = vadd.f32 %v437, %v525
    %v527 = vpop.f32.mrb[0].mxu0
    %528 = vdwg.mxu0
    %529 = vmatprep.subr.mxu0 0.0
    %v530 = vand.u32 %v64, 4294901760
    %531 = vmatpush1.msra.mxu0 %v530
    %532 = vmatprep.subr.mxu0 0.0
    %v533 = vand.u32 %v65, 4294901760
    %534 = vmatpush1.msra.mxu0 %v533
    %535 = vmatprep.subr.mxu0 0.0
    %v536 = vand.u32 %v66, 4294901760
    %537 = vmatpush1.msra.mxu0 %v536
    %538 = vmatprep.subr.mxu0 0.0
    %v539 = vand.u32 %v67, 4294901760
    %540 = vmatpush1.msra.mxu0 %v539
    %541 = vmatprep.subr.mxu0 0.0
    %542 = vmatpush1.msra.mxu0 0.0
    %543 = vmatprep.subr.mxu0 0.0
    %544 = vmatpush1.msra.mxu0 0.0
    %545 = vmatprep.subr.mxu0 0.0
    %546 = vmatpush1.msra.mxu0 0.0
    %547 = vmatprep.subr.mxu0 0.0
    %548 = vmatpush1.msra.mxu0 0.0
    %549 = vmatprep.subr.mxu0 0.0
    %550 = vmatpush1.msra.mxu0 0.0
    %551 = vmatprep.subr.mxu0 0.0
    %552 = vmatpush1.msra.mxu0 0.0
    %553 = vmatprep.subr.mxu0 0.0
    %554 = vmatpush1.msra.mxu0 0.0
    %555 = vmatprep.subr.mxu0 0.0
    %556 = vmatpush1.msra.mxu0 0.0
    %557 = vmatprep.subr.mxu0 0.0
    %558 = vmatpush1.msra.mxu0 0.0
    %559 = vmatprep.subr.mxu0 0.0
    %560 = vmatpush1.msra.mxu0 0.0
    %561 = vmatprep.subr.mxu0 0.0
    %562 = vmatpush1.msra.mxu0 0.0
    %563 = vmatprep.subr.mxu0 0.0
    %564 = vmatpush1.msra.mxu0 0.0
    %565 = vmatprep.subr.mxu0 0.0
    %566 = vmatpush1.msra.mxu0 0.0
    %567 = vmatprep.subr.mxu0 0.0
    %568 = vmatpush1.msra.mxu0 0.0
    %569 = vmatprep.subr.mxu0 0.0
    %570 = vmatpush1.msra.mxu0 0.0
    %571 = vmatprep.subr.mxu0 0.0
    %572 = vmatpush1.msra.mxu0 0.0
    %573 = vmatprep.subr.mxu0 0.0
    %574 = vmatpush1.msra.mxu0 0.0
    %575 = vmatprep.subr.mxu0 0.0
    %576 = vmatpush1.msra.mxu0 0.0
    %577 = vmatprep.subr.mxu0 0.0
    %578 = vmatpush1.msra.mxu0 0.0
    %579 = vmatprep.subr.mxu0 0.0
    %580 = vmatpush1.msra.mxu0 0.0
    %581 = vmatprep.subr.mxu0 0.0
    %582 = vmatpush1.msra.mxu0 0.0
    %583 = vmatprep.subr.mxu0 0.0
    %584 = vmatpush1.msra.mxu0 0.0
    %585 = vmatprep.subr.mxu0 0.0
    %586 = vmatpush1.msra.mxu0 0.0
    %587 = vmatprep.subr.mxu0 0.0
    %588 = vmatpush1.msra.mxu0 0.0
    %589 = vmatprep.subr.mxu0 0.0
    %590 = vmatpush1.msra.mxu0 0.0
    %591 = vmatprep.subr.mxu0 0.0
    %592 = vmatpush1.msra.mxu0 0.0
    %593 = vmatprep.subr.mxu0 0.0
    %594 = vmatpush1.msra.mxu0 0.0
    %595 = vmatprep.subr.mxu0 0.0
    %596 = vmatpush1.msra.mxu0 0.0
    %597 = vmatprep.mubr.f32.mxu0 0.0
    %v598 = vand.u32 %v77, 4294901760
    %599 = vmatmul.mubr.f32.gmra.mrb[0].mxu0 %v598
    %v600 = vpop.f32.mrb[0].mxu0
    %v601 = vadd.f32 %v520, %v600
    %v602 = vpop.f32.mrb[0].mxu0
    %603 = vmatprep.mubr.f32.mxu0 0.0
    %v604 = vand.u32 %v80, 4294901760
    %605 = vmatmul.mubr.f32.gmra.mrb[0].mxu0 %v604
    %v606 = vpop.f32.mrb[0].mxu0
    %v607 = vadd.f32 %v526, %v606
    %v608 = vpop.f32.mrb[0].mxu0
    %609 = vdwg.mxu0
    %v610 = vmax.f32 %v601, 0.0
    %v611 = vmax.f32 %v607, 0.0
    %v612 = vld [vmem:[#allocation7] sm:$0xff]
    %v613 = vld [vmem:[#allocation7 + $0x8] sm:$0xff]
    %v614 = vld [vmem:[#allocation7 + $0x10] sm:$0xff]
    %v615 = vld [vmem:[#allocation7 + $0x18] sm:$0xff]
    %v616 = vld [vmem:[%s4] sm:$0x1]
    %v618 = vlaneseq
    %v619 = vshrl.u32 %v618, 7
    %v620 = vsub.s32 0, %v619
    %v621 = vrot.slane %v616, %v620
    %v624 = vsel %vm75, %v610, 0
    %v627 = vsel %vm75, %v611, 0
    %629 = vmatprep.subr.mxu0 0.0
    %v630 = vand.u32 %v612, 4294901760
    %631 = vmatpush1.msra.mxu0 %v630
    %632 = vmatprep.subr.mxu0 0.0
    %v633 = vand.u32 %v613, 4294901760
    %634 = vmatpush1.msra.mxu0 %v633
    %635 = vmatprep.subr.mxu0 0.0
    %v636 = vand.u32 %v614, 4294901760
    %637 = vmatpush1.msra.mxu0 %v636
    %638 = vmatprep.subr.mxu0 0.0
    %v639 = vand.u32 %v615, 4294901760
    %640 = vmatpush1.msra.mxu0 %v639
    %641 = vmatprep.subr.mxu0 0.0
    %642 = vmatpush1.msra.mxu0 0.0
    %643 = vmatprep.subr.mxu0 0.0
    %644 = vmatpush1.msra.mxu0 0.0
    %645 = vmatprep.subr.mxu0 0.0
    %646 = vmatpush1.msra.mxu0 0.0
    %647 = vmatprep.subr.mxu0 0.0
    %648 = vmatpush1.msra.mxu0 0.0
    %649 = vmatprep.subr.mxu0 0.0
    %650 = vmatpush1.msra.mxu0 0.0
    %651 = vmatprep.subr.mxu0 0.0
    %652 = vmatpush1.msra.mxu0 0.0
    %653 = vmatprep.subr.mxu0 0.0
    %654 = vmatpush1.msra.mxu0 0.0
    %655 = vmatprep.subr.mxu0 0.0
    %656 = vmatpush1.msra.mxu0 0.0
    %657 = vmatprep.subr.mxu0 0.0
    %658 = vmatpush1.msra.mxu0 0.0
    %659 = vmatprep.subr.mxu0 0.0
    %660 = vmatpush1.msra.mxu0 0.0
    %661 = vmatprep.subr.mxu0 0.0
    %662 = vmatpush1.msra.mxu0 0.0
    %663 = vmatprep.subr.mxu0 0.0
    %664 = vmatpush1.msra.mxu0 0.0
    %665 = vmatprep.subr.mxu0 0.0
    %666 = vmatpush1.msra.mxu0 0.0
    %667 = vmatprep.subr.mxu0 0.0
    %668 = vmatpush1.msra.mxu0 0.0
    %669 = vmatprep.subr.mxu0 0.0
    %670 = vmatpush1.msra.mxu0 0.0
    %671 = vmatprep.subr.mxu0 0.0
    %672 = vmatpush1.msra.mxu0 0.0
    %673 = vmatprep.subr.mxu0 0.0
    %674 = vmatpush1.msra.mxu0 0.0
    %675 = vmatprep.subr.mxu0 0.0
    %676 = vmatpush1.msra.mxu0 0.0
    %677 = vmatprep.subr.mxu0 0.0
    %678 = vmatpush1.msra.mxu0 0.0
    %679 = vmatprep.subr.mxu0 0.0
    %680 = vmatpush1.msra.mxu0 0.0
    %681 = vmatprep.subr.mxu0 0.0
    %682 = vmatpush1.msra.mxu0 0.0
    %683 = vmatprep.subr.mxu0 0.0
    %684 = vmatpush1.msra.mxu0 0.0
    %685 = vmatprep.subr.mxu0 0.0
    %686 = vmatpush1.msra.mxu0 0.0
    %687 = vmatprep.subr.mxu0 0.0
    %688 = vmatpush1.msra.mxu0 0.0
    %689 = vmatprep.subr.mxu0 0.0
    %690 = vmatpush1.msra.mxu0 0.0
    %691 = vmatprep.subr.mxu0 0.0
    %692 = vmatpush1.msra.mxu0 0.0
    %693 = vmatprep.subr.mxu0 0.0
    %694 = vmatpush1.msra.mxu0 0.0
    %695 = vmatprep.subr.mxu0 0.0
    %696 = vmatpush1.msra.mxu0 0.0
    %697 = vmatprep.mubr.f32.mxu0 0.0
    %v698 = vand.u32 %v624, 4294901760
    %v699 = vsub.f32 %v624, %v698
    %v700 = vand.u32 %v699, 4294901760
    %v701 = vsub.f32 %v699, %v700
    %v702 = vand.u32 %v701, 4294901760
    %703 = vmatmul.mubr.f32.gmra.mrb[0].mxu0 %v702
    %v704 = vpop.f32.mrb[0].mxu0
    %v705 = vadd.f32 %v621, %v704
    %v706 = vpop.f32.mrb[0].mxu0
    %707 = vmatprep.mubr.f32.mxu0 0.0
    %v708 = vand.u32 %v627, 4294901760
    %v709 = vsub.f32 %v627, %v708
    %v710 = vand.u32 %v709, 4294901760
    %v711 = vsub.f32 %v709, %v710
    %v712 = vand.u32 %v711, 4294901760
    %713 = vmatmul.mubr.f32.gmra.mrb[0].mxu0 %v712
    %v714 = vpop.f32.mrb[0].mxu0
    %v715 = vadd.f32 %v621, %v714
    %v716 = vpop.f32.mrb[0].mxu0
    %717 = vdwg.mxu0
    %718 = vmatprep.subr.mxu0 0.0
    %v719 = vand.u32 %v612, 4294901760
    %v720 = vsub.f32 %v612, %v719
    %v721 = vand.u32 %v720, 4294901760
    %v722 = vsub.f32 %v720, %v721
    %v723 = vand.u32 %v722, 4294901760
    %724 = vmatpush1.msra.mxu0 %v723
    %725 = vmatprep.subr.mxu0 0.0
    %v726 = vand.u32 %v613, 4294901760
    %v727 = vsub.f32 %v613, %v726
    %v728 = vand.u32 %v727, 4294901760
    %v729 = vsub.f32 %v727, %v728
    %v730 = vand.u32 %v729, 4294901760
    %731 = vmatpush1.msra.mxu0 %v730
    %732 = vmatprep.subr.mxu0 0.0
    %v733 = vand.u32 %v614, 4294901760
    %v734 = vsub.f32 %v614, %v733
    %v735 = vand.u32 %v734, 4294901760
    %v736 = vsub.f32 %v734, %v735
    %v737 = vand.u32 %v736, 4294901760
    %738 = vmatpush1.msra.mxu0 %v737
    %739 = vmatprep.subr.mxu0 0.0
    %v740 = vand.u32 %v615, 4294901760
    %v741 = vsub.f32 %v615, %v740
    %v742 = vand.u32 %v741, 4294901760
    %v743 = vsub.f32 %v741, %v742
    %v744 = vand.u32 %v743, 4294901760
    %745 = vmatpush1.msra.mxu0 %v744
    %746 = vmatprep.subr.mxu0 0.0
    %747 = vmatpush1.msra.mxu0 0.0
    %748 = vmatprep.subr.mxu0 0.0
    %749 = vmatpush1.msra.mxu0 0.0
    %750 = vmatprep.subr.mxu0 0.0
    %751 = vmatpush1.msra.mxu0 0.0
    %752 = vmatprep.subr.mxu0 0.0
    %753 = vmatpush1.msra.mxu0 0.0
    %754 = vmatprep.subr.mxu0 0.0
    %755 = vmatpush1.msra.mxu0 0.0
    %756 = vmatprep.subr.mxu0 0.0
    %757 = vmatpush1.msra.mxu0 0.0
    %758 = vmatprep.subr.mxu0 0.0
    %759 = vmatpush1.msra.mxu0 0.0
    %760 = vmatprep.subr.mxu0 0.0
    %761 = vmatpush1.msra.mxu0 0.0
    %762 = vmatprep.subr.mxu0 0.0
    %763 = vmatpush1.msra.mxu0 0.0
    %764 = vmatprep.subr.mxu0 0.0
    %765 = vmatpush1.msra.mxu0 0.0
    %766 = vmatprep.subr.mxu0 0.0
    %767 = vmatpush1.msra.mxu0 0.0
    %768 = vmatprep.subr.mxu0 0.0
    %769 = vmatpush1.msra.mxu0 0.0
    %770 = vmatprep.subr.mxu0 0.0
    %771 = vmatpush1.msra.mxu0 0.0
    %772 = vmatprep.subr.mxu0 0.0
    %773 = vmatpush1.msra.mxu0 0.0
    %774 = vmatprep.subr.mxu0 0.0
    %775 = vmatpush1.msra.mxu0 0.0
    %776 = vmatprep.subr.mxu0 0.0
    %777 = vmatpush1.msra.mxu0 0.0
    %778 = vmatprep.subr.mxu0 0.0
    %779 = vmatpush1.msra.mxu0 0.0
    %780 = vmatprep.subr.mxu0 0.0
    %781 = vmatpush1.msra.mxu0 0.0
    %782 = vmatprep.subr.mxu0 0.0
    %783 = vmatpush1.msra.mxu0 0.0
    %784 = vmatprep.subr.mxu0 0.0
    %785 = vmatpush1.msra.mxu0 0.0
    %786 = vmatprep.subr.mxu0 0.0
    %787 = vmatpush1.msra.mxu0 0.0
    %788 = vmatprep.subr.mxu0 0.0
    %789 = vmatpush1.msra.mxu0 0.0
    %790 = vmatprep.subr.mxu0 0.0
    %791 = vmatpush1.msra.mxu0 0.0
    %792 = vmatprep.subr.mxu0 0.0
    %793 = vmatpush1.msra.mxu0 0.0
    %794 = vmatprep.subr.mxu0 0.0
    %795 = vmatpush1.msra.mxu0 0.0
    %796 = vmatprep.subr.mxu0 0.0
    %797 = vmatpush1.msra.mxu0 0.0
    %798 = vmatprep.subr.mxu0 0.0
    %799 = vmatpush1.msra.mxu0 0.0
    %800 = vmatprep.subr.mxu0 0.0
    %801 = vmatpush1.msra.mxu0 0.0
    %802 = vmatprep.mubr.f32.mxu0 0.0
    %v803 = vand.u32 %v624, 4294901760
    %804 = vmatmul.mubr.f32.gmra.mrb[0].mxu0 %v803
    %v805 = vpop.f32.mrb[0].mxu0
    %v806 = vadd.f32 %v705, %v805
    %v807 = vpop.f32.mrb[0].mxu0
    %808 = vmatprep.mubr.f32.mxu0 0.0
    %v809 = vand.u32 %v627, 4294901760
    %810 = vmatmul.mubr.f32.gmra.mrb[0].mxu0 %v809
    %v811 = vpop.f32.mrb[0].mxu0
    %v812 = vadd.f32 %v715, %v811
    %v813 = vpop.f32.mrb[0].mxu0
    %814 = vdwg.mxu0
    %815 = vmatprep.subr.mxu0 0.0
    %v816 = vand.u32 %v612, 4294901760
    %v817 = vsub.f32 %v612, %v816
    %818 = vmatpush1.msra.mxu0 %v817
    %819 = vmatprep.subr.mxu0 0.0
    %v820 = vand.u32 %v613, 4294901760
    %v821 = vsub.f32 %v613, %v820
    %822 = vmatpush1.msra.mxu0 %v821
    %823 = vmatprep.subr.mxu0 0.0
    %v824 = vand.u32 %v614, 4294901760
    %v825 = vsub.f32 %v614, %v824
    %826 = vmatpush1.msra.mxu0 %v825
    %827 = vmatprep.subr.mxu0 0.0
    %v828 = vand.u32 %v615, 4294901760
    %v829 = vsub.f32 %v615, %v828
    %830 = vmatpush1.msra.mxu0 %v829
    %831 = vmatprep.subr.mxu0 0.0
    %832 = vmatpush1.msra.mxu0 0.0
    %833 = vmatprep.subr.mxu0 0.0
    %834 = vmatpush1.msra.mxu0 0.0
    %835 = vmatprep.subr.mxu0 0.0
    %836 = vmatpush1.msra.mxu0 0.0
    %837 = vmatprep.subr.mxu0 0.0
    %838 = vmatpush1.msra.mxu0 0.0
    %839 = vmatprep.subr.mxu0 0.0
    %840 = vmatpush1.msra.mxu0 0.0
    %841 = vmatprep.subr.mxu0 0.0
    %842 = vmatpush1.msra.mxu0 0.0
    %843 = vmatprep.subr.mxu0 0.0
    %844 = vmatpush1.msra.mxu0 0.0
    %845 = vmatprep.subr.mxu0 0.0
    %846 = vmatpush1.msra.mxu0 0.0
    %847 = vmatprep.subr.mxu0 0.0
    %848 = vmatpush1.msra.mxu0 0.0
    %849 = vmatprep.subr.mxu0 0.0
    %850 = vmatpush1.msra.mxu0 0.0
    %851 = vmatprep.subr.mxu0 0.0
    %852 = vmatpush1.msra.mxu0 0.0
    %853 = vmatprep.subr.mxu0 0.0
    %854 = vmatpush1.msra.mxu0 0.0
    %855 = vmatprep.subr.mxu0 0.0
    %856 = vmatpush1.msra.mxu0 0.0
    %857 = vmatprep.subr.mxu0 0.0
    %858 = vmatpush1.msra.mxu0 0.0
    %859 = vmatprep.subr.mxu0 0.0
    %860 = vmatpush1.msra.mxu0 0.0
    %861 = vmatprep.subr.mxu0 0.0
    %862 = vmatpush1.msra.mxu0 0.0
    %863 = vmatprep.subr.mxu0 0.0
    %864 = vmatpush1.msra.mxu0 0.0
    %865 = vmatprep.subr.mxu0 0.0
    %866 = vmatpush1.msra.mxu0 0.0
    %867 = vmatprep.subr.mxu0 0.0
    %868 = vmatpush1.msra.mxu0 0.0
    %869 = vmatprep.subr.mxu0 0.0
    %870 = vmatpush1.msra.mxu0 0.0
    %871 = vmatprep.subr.mxu0 0.0
    %872 = vmatpush1.msra.mxu0 0.0
    %873 = vmatprep.subr.mxu0 0.0
    %874 = vmatpush1.msra.mxu0 0.0
    %875 = vmatprep.subr.mxu0 0.0
    %876 = vmatpush1.msra.mxu0 0.0
    %877 = vmatprep.subr.mxu0 0.0
    %878 = vmatpush1.msra.mxu0 0.0
    %879 = vmatprep.subr.mxu0 0.0
    %880 = vmatpush1.msra.mxu0 0.0
    %881 = vmatprep.subr.mxu0 0.0
    %882 = vmatpush1.msra.mxu0 0.0
    %883 = vmatprep.subr.mxu0 0.0
    %884 = vmatpush1.msra.mxu0 0.0
    %885 = vmatprep.subr.mxu0 0.0
    %886 = vmatpush1.msra.mxu0 0.0
    %887 = vmatprep.mubr.f32.mxu0 0.0
    %v888 = vand.u32 %v624, 4294901760
    %v889 = vsub.f32 %v624, %v888
    %890 = vmatmul.mubr.f32.gmra.mrb[0].mxu0 %v889
    %v891 = vpop.f32.mrb[0].mxu0
    %v892 = vadd.f32 %v806, %v891
    %v893 = vpop.f32.mrb[0].mxu0
    %894 = vmatprep.mubr.f32.mxu0 0.0
    %v895 = vand.u32 %v627, 4294901760
    %v896 = vsub.f32 %v627, %v895
    %897 = vmatmul.mubr.f32.gmra.mrb[0].mxu0 %v896
    %v898 = vpop.f32.mrb[0].mxu0
    %v899 = vadd.f32 %v812, %v898
    %v900 = vpop.f32.mrb[0].mxu0
    %901 = vdwg.mxu0
    %902 = vmatprep.subr.mxu0 0.0
    %v903 = vand.u32 %v612, 4294901760
    %904 = vmatpush1.msra.mxu0 %v903
    %905 = vmatprep.subr.mxu0 0.0
    %v906 = vand.u32 %v613, 4294901760
    %907 = vmatpush1.msra.mxu0 %v906
    %908 = vmatprep.subr.mxu0 0.0
    %v909 = vand.u32 %v614, 4294901760
    %910 = vmatpush1.msra.mxu0 %v909
    %911 = vmatprep.subr.mxu0 0.0
    %v912 = vand.u32 %v615, 4294901760
    %913 = vmatpush1.msra.mxu0 %v912
    %914 = vmatprep.subr.mxu0 0.0
    %915 = vmatpush1.msra.mxu0 0.0
    %916 = vmatprep.subr.mxu0 0.0
    %917 = vmatpush1.msra.mxu0 0.0
    %918 = vmatprep.subr.mxu0 0.0
    %919 = vmatpush1.msra.mxu0 0.0
    %920 = vmatprep.subr.mxu0 0.0
    %921 = vmatpush1.msra.mxu0 0.0
    %922 = vmatprep.subr.mxu0 0.0
    %923 = vmatpush1.msra.mxu0 0.0
    %924 = vmatprep.subr.mxu0 0.0
    %925 = vmatpush1.msra.mxu0 0.0
    %926 = vmatprep.subr.mxu0 0.0
    %927 = vmatpush1.msra.mxu0 0.0
    %928 = vmatprep.subr.mxu0 0.0
    %929 = vmatpush1.msra.mxu0 0.0
    %930 = vmatprep.subr.mxu0 0.0
    %931 = vmatpush1.msra.mxu0 0.0
    %932 = vmatprep.subr.mxu0 0.0
    %933 = vmatpush1.msra.mxu0 0.0
    %934 = vmatprep.subr.mxu0 0.0
    %935 = vmatpush1.msra.mxu0 0.0
    %936 = vmatprep.subr.mxu0 0.0
    %937 = vmatpush1.msra.mxu0 0.0
    %938 = vmatprep.subr.mxu0 0.0
    %939 = vmatpush1.msra.mxu0 0.0
    %940 = vmatprep.subr.mxu0 0.0
    %941 = vmatpush1.msra.mxu0 0.0
    %942 = vmatprep.subr.mxu0 0.0
    %943 = vmatpush1.msra.mxu0 0.0
    %944 = vmatprep.subr.mxu0 0.0
    %945 = vmatpush1.msra.mxu0 0.0
    %946 = vmatprep.subr.mxu0 0.0
    %947 = vmatpush1.msra.mxu0 0.0
    %948 = vmatprep.subr.mxu0 0.0
    %949 = vmatpush1.msra.mxu0 0.0
    %950 = vmatprep.subr.mxu0 0.0
    %951 = vmatpush1.msra.mxu0 0.0
    %952 = vmatprep.subr.mxu0 0.0
    %953 = vmatpush1.msra.mxu0 0.0
    %954 = vmatprep.subr.mxu0 0.0
    %955 = vmatpush1.msra.mxu0 0.0
    %956 = vmatprep.subr.mxu0 0.0
    %957 = vmatpush1.msra.mxu0 0.0
    %958 = vmatprep.subr.mxu0 0.0
    %959 = vmatpush1.msra.mxu0 0.0
    %960 = vmatprep.subr.mxu0 0.0
    %961 = vmatpush1.msra.mxu0 0.0
    %962 = vmatprep.subr.mxu0 0.0
    %963 = vmatpush1.msra.mxu0 0.0
    %964 = vmatprep.subr.mxu0 0.0
    %965 = vmatpush1.msra.mxu0 0.0
    %966 = vmatprep.subr.mxu0 0.0
    %967 = vmatpush1.msra.mxu0 0.0
    %968 = vmatprep.subr.mxu0 0.0
    %969 = vmatpush1.msra.mxu0 0.0
    %970 = vmatprep.mubr.f32.mxu0 0.0
    %v971 = vand.u32 %v624, 4294901760
    %v972 = vsub.f32 %v624, %v971
    %v973 = vand.u32 %v972, 4294901760
    %974 = vmatmul.mubr.f32.gmra.mrb[0].mxu0 %v973
    %v975 = vpop.f32.mrb[0].mxu0
    %v976 = vadd.f32 %v892, %v975
    %v977 = vpop.f32.mrb[0].mxu0
    %978 = vmatprep.mubr.f32.mxu0 0.0
    %v979 = vand.u32 %v627, 4294901760
    %v980 = vsub.f32 %v627, %v979
    %v981 = vand.u32 %v980, 4294901760
    %982 = vmatmul.mubr.f32.gmra.mrb[0].mxu0 %v981
    %v983 = vpop.f32.mrb[0].mxu0
    %v984 = vadd.f32 %v899, %v983
    %v985 = vpop.f32.mrb[0].mxu0
    %986 = vdwg.mxu0
    %987 = vmatprep.subr.mxu0 0.0
    %v988 = vand.u32 %v612, 4294901760
    %v989 = vsub.f32 %v612, %v988
    %v990 = vand.u32 %v989, 4294901760
    %991 = vmatpush1.msra.mxu0 %v990
    %992 = vmatprep.subr.mxu0 0.0
    %v993 = vand.u32 %v613, 4294901760
    %v994 = vsub.f32 %v613, %v993
    %v995 = vand.u32 %v994, 4294901760
    %996 = vmatpush1.msra.mxu0 %v995
    %997 = vmatprep.subr.mxu0 0.0
    %v998 = vand.u32 %v614, 4294901760
    %v999 = vsub.f32 %v614, %v998
    %v1000 = vand.u32 %v999, 4294901760
    %1001 = vmatpush1.msra.mxu0 %v1000
    %1002 = vmatprep.subr.mxu0 0.0
    %v1003 = vand.u32 %v615, 4294901760
    %v1004 = vsub.f32 %v615, %v1003
    %v1005 = vand.u32 %v1004, 4294901760
    %1006 = vmatpush1.msra.mxu0 %v1005
    %1007 = vmatprep.subr.mxu0 0.0
    %1008 = vmatpush1.msra.mxu0 0.0
    %1009 = vmatprep.subr.mxu0 0.0
    %1010 = vmatpush1.msra.mxu0 0.0
    %1011 = vmatprep.subr.mxu0 0.0
    %1012 = vmatpush1.msra.mxu0 0.0
    %1013 = vmatprep.subr.mxu0 0.0
    %1014 = vmatpush1.msra.mxu0 0.0
    %1015 = vmatprep.subr.mxu0 0.0
    %1016 = vmatpush1.msra.mxu0 0.0
    %1017 = vmatprep.subr.mxu0 0.0
    %1018 = vmatpush1.msra.mxu0 0.0
    %1019 = vmatprep.subr.mxu0 0.0
    %1020 = vmatpush1.msra.mxu0 0.0
    %1021 = vmatprep.subr.mxu0 0.0
    %1022 = vmatpush1.msra.mxu0 0.0
    %1023 = vmatprep.subr.mxu0 0.0
    %1024 = vmatpush1.msra.mxu0 0.0
    %1025 = vmatprep.subr.mxu0 0.0
    %1026 = vmatpush1.msra.mxu0 0.0
    %1027 = vmatprep.subr.mxu0 0.0
    %1028 = vmatpush1.msra.mxu0 0.0
    %1029 = vmatprep.subr.mxu0 0.0
    %1030 = vmatpush1.msra.mxu0 0.0
    %1031 = vmatprep.subr.mxu0 0.0
    %1032 = vmatpush1.msra.mxu0 0.0
    %1033 = vmatprep.subr.mxu0 0.0
    %1034 = vmatpush1.msra.mxu0 0.0
    %1035 = vmatprep.subr.mxu0 0.0
    %1036 = vmatpush1.msra.mxu0 0.0
    %1037 = vmatprep.subr.mxu0 0.0
    %1038 = vmatpush1.msra.mxu0 0.0
    %1039 = vmatprep.subr.mxu0 0.0
    %1040 = vmatpush1.msra.mxu0 0.0
    %1041 = vmatprep.subr.mxu0 0.0
    %1042 = vmatpush1.msra.mxu0 0.0
    %1043 = vmatprep.subr.mxu0 0.0
    %1044 = vmatpush1.msra.mxu0 0.0
    %1045 = vmatprep.subr.mxu0 0.0
    %1046 = vmatpush1.msra.mxu0 0.0
    %1047 = vmatprep.subr.mxu0 0.0
    %1048 = vmatpush1.msra.mxu0 0.0
    %1049 = vmatprep.subr.mxu0 0.0
    %1050 = vmatpush1.msra.mxu0 0.0
    %1051 = vmatprep.subr.mxu0 0.0
    %1052 = vmatpush1.msra.mxu0 0.0
    %1053 = vmatprep.subr.mxu0 0.0
    %1054 = vmatpush1.msra.mxu0 0.0
    %1055 = vmatprep.subr.mxu0 0.0
    %1056 = vmatpush1.msra.mxu0 0.0
    %1057 = vmatprep.subr.mxu0 0.0
    %1058 = vmatpush1.msra.mxu0 0.0
    %1059 = vmatprep.subr.mxu0 0.0
    %1060 = vmatpush1.msra.mxu0 0.0
    %1061 = vmatprep.subr.mxu0 0.0
    %1062 = vmatpush1.msra.mxu0 0.0
    %1063 = vmatprep.mubr.f32.mxu0 0.0
    %v1064 = vand.u32 %v624, 4294901760
    %1065 = vmatmul.mubr.f32.gmra.mrb[0].mxu0 %v1064
    %v1066 = vpop.f32.mrb[0].mxu0
    %v1067 = vadd.f32 %v976, %v1066
    %v1068 = vpop.f32.mrb[0].mxu0
    %1069 = vmatprep.mubr.f32.mxu0 0.0
    %v1070 = vand.u32 %v627, 4294901760
    %1071 = vmatmul.mubr.f32.gmra.mrb[0].mxu0 %v1070
    %v1072 = vpop.f32.mrb[0].mxu0
    %v1073 = vadd.f32 %v984, %v1072
    %v1074 = vpop.f32.mrb[0].mxu0
    %1075 = vdwg.mxu0
    %1076 = vmatprep.subr.mxu0 0.0
    %v1077 = vand.u32 %v612, 4294901760
    %1078 = vmatpush1.msra.mxu0 %v1077
    %1079 = vmatprep.subr.mxu0 0.0
    %v1080 = vand.u32 %v613, 4294901760
    %1081 = vmatpush1.msra.mxu0 %v1080
    %1082 = vmatprep.subr.mxu0 0.0
    %v1083 = vand.u32 %v614, 4294901760
    %1084 = vmatpush1.msra.mxu0 %v1083
    %1085 = vmatprep.subr.mxu0 0.0
    %v1086 = vand.u32 %v615, 4294901760
    %1087 = vmatpush1.msra.mxu0 %v1086
    %1088 = vmatprep.subr.mxu0 0.0
    %1089 = vmatpush1.msra.mxu0 0.0
    %1090 = vmatprep.subr.mxu0 0.0
    %1091 = vmatpush1.msra.mxu0 0.0
    %1092 = vmatprep.subr.mxu0 0.0
    %1093 = vmatpush1.msra.mxu0 0.0
    %1094 = vmatprep.subr.mxu0 0.0
    %1095 = vmatpush1.msra.mxu0 0.0
    %1096 = vmatprep.subr.mxu0 0.0
    %1097 = vmatpush1.msra.mxu0 0.0
    %1098 = vmatprep.subr.mxu0 0.0
    %1099 = vmatpush1.msra.mxu0 0.0
    %1100 = vmatprep.subr.mxu0 0.0
    %1101 = vmatpush1.msra.mxu0 0.0
    %1102 = vmatprep.subr.mxu0 0.0
    %1103 = vmatpush1.msra.mxu0 0.0
    %1104 = vmatprep.subr.mxu0 0.0
    %1105 = vmatpush1.msra.mxu0 0.0
    %1106 = vmatprep.subr.mxu0 0.0
    %1107 = vmatpush1.msra.mxu0 0.0
    %1108 = vmatprep.subr.mxu0 0.0
    %1109 = vmatpush1.msra.mxu0 0.0
    %1110 = vmatprep.subr.mxu0 0.0
    %1111 = vmatpush1.msra.mxu0 0.0
    %1112 = vmatprep.subr.mxu0 0.0
    %1113 = vmatpush1.msra.mxu0 0.0
    %1114 = vmatprep.subr.mxu0 0.0
    %1115 = vmatpush1.msra.mxu0 0.0
    %1116 = vmatprep.subr.mxu0 0.0
    %1117 = vmatpush1.msra.mxu0 0.0
    %1118 = vmatprep.subr.mxu0 0.0
    %1119 = vmatpush1.msra.mxu0 0.0
    %1120 = vmatprep.subr.mxu0 0.0
    %1121 = vmatpush1.msra.mxu0 0.0
    %1122 = vmatprep.subr.mxu0 0.0
    %1123 = vmatpush1.msra.mxu0 0.0
    %1124 = vmatprep.subr.mxu0 0.0
    %1125 = vmatpush1.msra.mxu0 0.0
    %1126 = vmatprep.subr.mxu0 0.0
    %1127 = vmatpush1.msra.mxu0 0.0
    %1128 = vmatprep.subr.mxu0 0.0
    %1129 = vmatpush1.msra.mxu0 0.0
    %1130 = vmatprep.subr.mxu0 0.0
    %1131 = vmatpush1.msra.mxu0 0.0
    %1132 = vmatprep.subr.mxu0 0.0
    %1133 = vmatpush1.msra.mxu0 0.0
    %1134 = vmatprep.subr.mxu0 0.0
    %1135 = vmatpush1.msra.mxu0 0.0
    %1136 = vmatprep.subr.mxu0 0.0
    %1137 = vmatpush1.msra.mxu0 0.0
    %1138 = vmatprep.subr.mxu0 0.0
    %1139 = vmatpush1.msra.mxu0 0.0
    %1140 = vmatprep.subr.mxu0 0.0
    %1141 = vmatpush1.msra.mxu0 0.0
    %1142 = vmatprep.subr.mxu0 0.0
    %1143 = vmatpush1.msra.mxu0 0.0
    %1144 = vmatprep.mubr.f32.mxu0 0.0
    %v1145 = vand.u32 %v624, 4294901760
    %1146 = vmatmul.mubr.f32.gmra.mrb[0].mxu0 %v1145
    %v1147 = vpop.f32.mrb[0].mxu0
    %v1148 = vadd.f32 %v1067, %v1147
    %v1149 = vpop.f32.mrb[0].mxu0
    %1150 = vmatprep.mubr.f32.mxu0 0.0
    %v1151 = vand.u32 %v627, 4294901760
    %1152 = vmatmul.mubr.f32.gmra.mrb[0].mxu0 %v1151
    %v1153 = vpop.f32.mrb[0].mxu0
    %v1154 = vadd.f32 %v1073, %v1153
    %v1155 = vpop.f32.mrb[0].mxu0
    %1156 = vdwg.mxu0
    %1157 = vst.msk [vmem:[#allocation8] sm:$0xff] %vm75, %v1148
    %1158 = vst.msk [vmem:[#allocation8 + $0x8] sm:$0xff] %vm75, %v1154
    // Predicated region
    $region34: #{tpu_custom_call.1} parent=1 // pred_check
      _
    $region35: #{tpu_custom_call.1} parent=1 // pred_check_branch
      %1160 = sbr.rel (0) target = $region37
    $region36: #{tpu_custom_call.1} parent=1 // pred_region
      %s1162 = ssub.s32 256, 256
      %1163 = vsyncadd [#allocation4], %s1162
      %s1164 = sshll.u32 [#allocation8], 4
      %s1165 = int_to_ptr.vmem [resolvable:$true] %s1164
      %1170 = dma.vmem_to_hbm [thread:$0]  %s1165, 256, %s5, [#allocation4], 128, 128, 8
    $region37: #{tpu_custom_call.1} parent=1 // pred_fallthru
      _
    // Predicated region
    $region38: #{tpu_custom_call.1} parent=1 // pred_check
      _
    $region39: #{tpu_custom_call.1} parent=1 // pred_check_branch
      %1172 = sbr.rel (0) target = $region41
    $region40: #{tpu_custom_call.1} parent=1 // pred_region
      %1173 = dma.done [#allocation4], 256
    $region41: #{tpu_custom_call.1} parent=1 // pred_fallthru
      _
    %1174 = vsyncpa [#allocation3], 1
    %1175 = vsyncpa [#allocation6], 1
    %1176 = vsyncpa [#allocation4], 1

</llo_original>
